<compile_context>
chip_gen: v6e
topology: v6e:2x2x1
jax: 0.10.0
libtpu: 0.0.40
codegen_flags: <defaults>
</compile_context>

<pallas_src>
import functools

import jax
import jax.numpy as jnp
from jax.experimental import pallas as pl
from jax.experimental.pallas import tpu as pltpu


def _round_up(x, m):
    return -(-x // m) * m


def _outconv_kernel(x_ref, w_ref, b_ref, o_ref, *, use_mxu):
    """One tile of the 1x1 conv.

    MXU path:
      x_ref: (1, C_in, T)      VMEM    w_ref: (C_out, C_in)  VMEM
      b_ref: (C_out, 1) f32    VMEM    o_ref: (1, C_out, T)  VMEM
    VPU path:
      x_ref: (tile_n, C_in, T) VMEM    w_ref: (C_out, C_in) f32 SMEM
      b_ref: (C_out, 1) f32    SMEM    o_ref: (tile_n, C_out, T) VMEM
    """
    if use_mxu:
        # Single (C_out, C_in) x (C_in, T) dot per grid step -> one MXU
        # push/pop per step instead of tile_n tiny unrolled dots.
        acc = jnp.dot(w_ref[...], x_ref[0], preferred_element_type=jnp.float32)
        o_ref[0] = (acc + b_ref[...].astype(jnp.float32)).astype(o_ref.dtype)
    else:
        tile_n, c_in, t = x_ref.shape
        c_out = o_ref.shape[1]
        # Unrolled broadcast-FMAs with SMEM scalar weights.  Each input
        # channel slice is loaded (and upcast) exactly once and reused across
        # all output channels; all output rows are assembled into one value so
        # a single unmasked full-block store is issued instead of C_out
        # sublane-masked stores.
        accs = [jnp.full((tile_n, 1, t), b_ref[co, 0], dtype=jnp.float32)
                for co in range(c_out)]
        for ci in range(c_in):                         # static unroll (tiny)
            xc = x_ref[:, ci:ci + 1, :].astype(jnp.float32)
            for co in range(c_out):                    # static unroll (tiny)
                accs[co] = accs[co] + w_ref[co, ci] * xc
        o_ref[...] = jnp.concatenate(accs, axis=1).astype(o_ref.dtype)


def _generation_budgets():
    """(tile VMEM budget, vmem_limit_bytes, default max_tile_hw) per TPU gen."""
    try:
        cap = getattr(pltpu.get_tpu_info(), "vmem_capacity_bytes", 64 << 20)
    except Exception:  # e.g. interpret mode / unusual platform
        cap = 64 << 20
    if cap >= (100 << 20):            # v5e / v6e: 128 MiB physical VMEM
        return 16 << 20, 64 << 20, 4096
    return 8 << 20, 32 << 20, 2048    # v7x: 64 MiB physical / 32 MiB scoped


def _pick_tiles(N, C_in, C_out, HW, itemsize, use_mxu, vmem_budget, max_tile_hw):
    """Pick (tile_n, tile_hw, hw_steps) against a double-buffered VMEM budget.

    The estimate accounts for sublane padding (channels rounded up to the
    packed-sublane multiple) and the f32 accumulator temps.
    """
    sub = max(8, 32 // itemsize)                  # 8 f32 / 16 bf16 / 32 int8
    ci_pad = _round_up(C_in, sub)
    co_pad = _round_up(C_out, sub)
    acc_pad = _round_up(C_out, 8)                 # f32 accumulators
    # Bytes per lane column per grid step at tile_n = 1: input + output blocks
    # (each double-buffered) plus f32 accumulator temps.
    per_lane = 2 * (ci_pad + co_pad) * itemsize + acc_pad * 4

    cap_hw = min(max_tile_hw, max(128, (vmem_budget // per_lane) // 128 * 128))
    if HW <= cap_hw:
        tile_hw = HW              # full extent: always a legal lane block
    else:
        tile_hw = cap_hw          # multiple of 128; ragged last tile via cdiv
    hw_steps = pl.cdiv(HW, tile_hw)

    if use_mxu:
        # One image per step; spend the VMEM on lane width instead.
        return 1, tile_hw, hw_steps

    # VPU path: batch images per step to amortize the ~0.35us/step overhead,
    # but keep the grid even and >= 4 steps where possible so both v7x
    # TensorCores stay fed (v5e/v6e have a single TC and are unaffected).
    step_bytes1 = per_lane * tile_hw
    total0 = N * hw_steps
    tile_n = 1
    for t in range(1, N + 1):
        if N % t:
            continue
        if t * step_bytes1 > vmem_budget:
            continue
        steps = (N // t) * hw_steps
        if total0 >= 4 and steps < 4:
            continue
        if total0 % 2 == 0 and steps % 2 != 0:
            continue
        tile_n = max(tile_n, t)
    return tile_n, tile_hw, hw_steps


def outconv_1x1(x_nchw, weight, bias, *, max_tile_hw=None):
    """PyTorch OutConv.forward (nn.Conv2d kernel_size=1) as a Pallas TPU kernel.

    Args:
      x_nchw: (N, C_in, H, W) input, PyTorch NCHW layout.
      weight: (C_out, C_in, 1, 1) conv weight (PyTorch layout).
      bias:   (C_out,) conv bias.
    Returns:
      (N, C_out, H, W) output, identical semantics to nn.Conv2d(kernel_size=1).
    """
    N, C_in, H, W = x_nchw.shape
    C_out = weight.shape[0]
    HW = H * W

    vmem_budget, vmem_limit, default_max_hw = _generation_budgets()
    if max_tile_hw is None:
        max_tile_hw = default_max_hw

    # Tiny-K matmuls waste the MXU, but past ~2*C_in*C_out VALU ops per pixel
    # the VPU path flips from HBM-bound to VALU-bound, so switch on the
    # product (not on each dim independently).
    use_mxu = (C_in * C_out) > 64

    itemsize = jnp.dtype(x_nchw.dtype).itemsize
    tile_n, tile_hw, hw_steps = _pick_tiles(
        N, C_in, C_out, HW, itemsize, use_mxu, vmem_budget, max_tile_hw)
    grid = (N // tile_n, hw_steps)

    # Free reshapes only - no transpose, no padding copy of the activation.
    x3 = x_nchw.reshape(N, C_in, HW)
    b_mat = bias.reshape(C_out, 1).astype(jnp.float32)

    if use_mxu:
        # NOTE: weights are cast to the activation dtype, so bf16 activations
        # use bf16 x bf16 -> f32 MXU products (f32 accumulation; exact up to
        # accumulation order for f32 activations).
        w_arg = weight.reshape(C_out, C_in).astype(x_nchw.dtype)
        w_spec = pl.BlockSpec((C_out, C_in), lambda n, j: (0, 0))
        b_spec = pl.BlockSpec((C_out, 1), lambda n, j: (0, 0))
    else:
        w_arg = weight.reshape(C_out, C_in).astype(jnp.float32)
        w_spec = pl.BlockSpec(memory_space=pltpu.MemorySpace.SMEM)
        b_spec = pl.BlockSpec(memory_space=pltpu.MemorySpace.SMEM)

    kernel = functools.partial(_outconv_kernel, use_mxu=use_mxu)

    out3 = pl.pallas_call(
        kernel,
        out_shape=jax.ShapeDtypeStruct((N, C_out, HW), x_nchw.dtype),
        grid_spec=pltpu.PrefetchScalarGridSpec(
            num_scalar_prefetch=0,
            grid=grid,
            in_specs=[
                pl.BlockSpec((tile_n, C_in, tile_hw), lambda n, j: (n, 0, j)),
                w_spec,
                b_spec,
            ],
            out_specs=pl.BlockSpec((tile_n, C_out, tile_hw),
                                   lambda n, j: (n, 0, j)),
        ),
        compiler_params=pltpu.CompilerParams(
            dimension_semantics=("parallel", "parallel"),
            vmem_limit_bytes=vmem_limit,
        ),
    )(x3, w_arg, b_mat)

    # Output is already NCHW-contiguous; only a free reshape remains.
    return out3.reshape(N, C_out, H, W)


if __name__ == "__main__":
    key = jax.random.PRNGKey(0)

    # --- Primary check: the typical UNet OutConv shape (VPU path, f32). ---
    N, C_in, C_out, H, W = 2, 4, 2, 16, 16
    kx, kw, kb = jax.random.split(key, 3)
    x = jax.random.normal(kx, (N, C_in, H, W), dtype=jnp.float32)
    weight = jax.random.normal(kw, (C_out, C_in, 1, 1), dtype=jnp.float32) * 0.1
    bias = jax.random.normal(kb, (C_out,), dtype=jnp.float32) * 0.1

    y = outconv_1x1(x, weight, bias)
    jax.block_until_ready(y)

    ref = jnp.einsum("nchw,oc->nohw", x, weight.reshape(C_out, C_in)) \
        + bias[None, :, None, None]
    assert y.shape == (N, C_out, H, W)
    assert jnp.allclose(y, ref, atol=1e-5, rtol=1e-5)

    # --- Secondary check: MXU path + ragged (non-128-divisible, multi-step)
    #     HW tiling, bf16 activations.  max_tile_hw=128 forces 3 HW steps with
    #     a ragged last tile (HW = 324). ---
    N2, Ci2, Co2, H2, W2 = 2, 32, 8, 18, 18
    k1, k2, k3 = jax.random.split(jax.random.PRNGKey(1), 3)
    x2 = jax.random.normal(k1, (N2, Ci2, H2, W2), dtype=jnp.float32).astype(jnp.bfloat16)
    w2 = (jax.random.normal(k2, (Co2, Ci2, 1, 1), dtype=jnp.float32) * 0.1
          ).astype(jnp.bfloat16)
    b2 = jax.random.normal(k3, (Co2,), dtype=jnp.float32) * 0.1

    y2 = outconv_1x1(x2, w2, b2, max_tile_hw=128)
    jax.block_until_ready(y2)

    ref2 = jnp.einsum("nchw,oc->nohw",
                      x2.astype(jnp.float32),
                      w2.reshape(Co2, Ci2).astype(jnp.float32)) \
        + b2[None, :, None, None]
    assert y2.shape == (N2, Co2, H2, W2)
    assert jnp.allclose(y2.astype(jnp.float32), ref2, atol=2e-2, rtol=2e-2)

    print("KERNEL_OK")
</pallas_src>

<mosaic_0001>
module attributes {stable_mosaic.version = 11 : i64} {
  func.func @_outconv_kernel(%arg0: i32, %arg1: i32, %arg2: memref<1x4x256xf32, #tpu.memory_space<vmem>>, %arg3: memref<2x4xf32, #tpu.memory_space<smem>>, %arg4: memref<2x1xf32, #tpu.memory_space<smem>>, %arg5: memref<1x2x256xf32, #tpu.memory_space<vmem>>) attributes {dimension_semantics = [#tpu.dimension_semantics<parallel>, #tpu.dimension_semantics<parallel>], iteration_bounds = array<i64: 2, 1>, scalar_prefetch = 0 : i64, scratch_operands = 0 : i64, tpu.core_type = #tpu.core_type<tc>, window_params = [{transform_indices = @transform_0, window_bounds = array<i64: 1, 4, 256>}, {transform_indices = @transform_1, window_bounds = array<i64: 2, 4>}, {transform_indices = @transform_2, window_bounds = array<i64: 2, 1>}, {transform_indices = @transform_3, window_bounds = array<i64: 1, 2, 256>}]} {
    %c0 = arith.constant 0 : index
    %c0_0 = arith.constant 0 : index
    %0 = memref.load %arg4[%c0, %c0_0] : memref<2x1xf32, #tpu.memory_space<smem>>
    %1 = vector.broadcast %0 : f32 to vector<1x1x256xf32>
    %c1 = arith.constant 1 : index
    %c0_1 = arith.constant 0 : index
    %2 = memref.load %arg4[%c1, %c0_1] : memref<2x1xf32, #tpu.memory_space<smem>>
    %3 = vector.broadcast %2 : f32 to vector<1x1x256xf32>
    %c0_2 = arith.constant 0 : index
    %c0_3 = arith.constant 0 : index
    %c0_4 = arith.constant 0 : index
    %4 = vector.load %arg2[%c0_2, %c0_3, %c0_4] : memref<1x4x256xf32, #tpu.memory_space<vmem>>, vector<1x1x256xf32>
    %c0_5 = arith.constant 0 : index
    %c0_6 = arith.constant 0 : index
    %5 = memref.load %arg3[%c0_5, %c0_6] : memref<2x4xf32, #tpu.memory_space<smem>>
    %6 = vector.broadcast %5 : f32 to vector<1x1x256xf32>
    %7 = arith.mulf %6, %4 : vector<1x1x256xf32>
    %8 = arith.addf %1, %7 : vector<1x1x256xf32>
    %c1_7 = arith.constant 1 : index
    %c0_8 = arith.constant 0 : index
    %9 = memref.load %arg3[%c1_7, %c0_8] : memref<2x4xf32, #tpu.memory_space<smem>>
    %10 = vector.broadcast %9 : f32 to vector<1x1x256xf32>
    %11 = arith.mulf %10, %4 : vector<1x1x256xf32>
    %12 = arith.addf %3, %11 : vector<1x1x256xf32>
    %c0_9 = arith.constant 0 : index
    %c1_10 = arith.constant 1 : index
    %c0_11 = arith.constant 0 : index
    %13 = vector.load %arg2[%c0_9, %c1_10, %c0_11] : memref<1x4x256xf32, #tpu.memory_space<vmem>>, vector<1x1x256xf32>
    %c0_12 = arith.constant 0 : index
    %c1_13 = arith.constant 1 : index
    %14 = memref.load %arg3[%c0_12, %c1_13] : memref<2x4xf32, #tpu.memory_space<smem>>
    %15 = vector.broadcast %14 : f32 to vector<1x1x256xf32>
    %16 = arith.mulf %15, %13 : vector<1x1x256xf32>
    %17 = arith.addf %8, %16 : vector<1x1x256xf32>
    %c1_14 = arith.constant 1 : index
    %c1_15 = arith.constant 1 : index
    %18 = memref.load %arg3[%c1_14, %c1_15] : memref<2x4xf32, #tpu.memory_space<smem>>
    %19 = vector.broadcast %18 : f32 to vector<1x1x256xf32>
    %20 = arith.mulf %19, %13 : vector<1x1x256xf32>
    %21 = arith.addf %12, %20 : vector<1x1x256xf32>
    %c0_16 = arith.constant 0 : index
    %c2 = arith.constant 2 : index
    %c0_17 = arith.constant 0 : index
    %22 = vector.load %arg2[%c0_16, %c2, %c0_17] : memref<1x4x256xf32, #tpu.memory_space<vmem>>, vector<1x1x256xf32>
    %c0_18 = arith.constant 0 : index
    %c2_19 = arith.constant 2 : index
    %23 = memref.load %arg3[%c0_18, %c2_19] : memref<2x4xf32, #tpu.memory_space<smem>>
    %24 = vector.broadcast %23 : f32 to vector<1x1x256xf32>
    %25 = arith.mulf %24, %22 : vector<1x1x256xf32>
    %26 = arith.addf %17, %25 : vector<1x1x256xf32>
    %c1_20 = arith.constant 1 : index
    %c2_21 = arith.constant 2 : index
    %27 = memref.load %arg3[%c1_20, %c2_21] : memref<2x4xf32, #tpu.memory_space<smem>>
    %28 = vector.broadcast %27 : f32 to vector<1x1x256xf32>
    %29 = arith.mulf %28, %22 : vector<1x1x256xf32>
    %30 = arith.addf %21, %29 : vector<1x1x256xf32>
    %c0_22 = arith.constant 0 : index
    %c3 = arith.constant 3 : index
    %c0_23 = arith.constant 0 : index
    %31 = vector.load %arg2[%c0_22, %c3, %c0_23] : memref<1x4x256xf32, #tpu.memory_space<vmem>>, vector<1x1x256xf32>
    %c0_24 = arith.constant 0 : index
    %c3_25 = arith.constant 3 : index
    %32 = memref.load %arg3[%c0_24, %c3_25] : memref<2x4xf32, #tpu.memory_space<smem>>
    %33 = vector.broadcast %32 : f32 to vector<1x1x256xf32>
    %34 = arith.mulf %33, %31 : vector<1x1x256xf32>
    %35 = arith.addf %26, %34 : vector<1x1x256xf32>
    %c1_26 = arith.constant 1 : index
    %c3_27 = arith.constant 3 : index
    %36 = memref.load %arg3[%c1_26, %c3_27] : memref<2x4xf32, #tpu.memory_space<smem>>
    %37 = vector.broadcast %36 : f32 to vector<1x1x256xf32>
    %38 = arith.mulf %37, %31 : vector<1x1x256xf32>
    %39 = arith.addf %30, %38 : vector<1x1x256xf32>
    %40 = tpu.concatenate %35, %39 in 1 : vector<1x1x256xf32>, vector<1x1x256xf32> -> vector<1x2x256xf32>
    %c0_28 = arith.constant 0 : index
    %c0_29 = arith.constant 0 : index
    %c0_30 = arith.constant 0 : index
    %41 = vector.load %arg5[%c0_28, %c0_29, %c0_30] : memref<1x2x256xf32, #tpu.memory_space<vmem>>, vector<1x2x256xf32>
    tpu.vector_store %arg5[%c0_28, %c0_29, %c0_30], %40 {strides = array<i32>} : memref<1x2x256xf32, #tpu.memory_space<vmem>>, vector<1x2x256xf32>,
    return
  }
  func.func @transform_0(%arg0: i32, %arg1: i32) -> (i32, i32, i32) {
    %c0_i32 = arith.constant 0 : i32
    %c0_i32_0 = arith.constant 0 : i32
    return %arg0, %c0_i32, %arg1 : i32, i32, i32
  }
  func.func @transform_1(%arg0: i32, %arg1: i32) -> (i32, i32) {
    %c0_i32 = arith.constant 0 : i32
    %c0_i32_0 = arith.constant 0 : i32
    %c0_i32_1 = arith.constant 0 : i32
    return %c0_i32, %c0_i32_0 : i32, i32
  }
  func.func @transform_2(%arg0: i32, %arg1: i32) -> (i32, i32) {
    %c0_i32 = arith.constant 0 : i32
    %c0_i32_0 = arith.constant 0 : i32
    %c0_i32_1 = arith.constant 0 : i32
    return %c0_i32, %c0_i32_0 : i32, i32
  }
  func.func @transform_3(%arg0: i32, %arg1: i32) -> (i32, i32, i32) {
    %c0_i32 = arith.constant 0 : i32
    %c0_i32_0 = arith.constant 0 : i32
    return %arg0, %c0_i32, %arg1 : i32, i32, i32
  }
}

</mosaic_0001>

<llo_original>
// kernel: tpu_custom_call.1
$region0: #{tpu_custom_call.1}
  #allocation0 [shape = 'u32[]', space=smem, size = 0x4, offset = 0x4, fixed_abs, tag = 'smem constant byte address 0x4 - core index']
  #allocation1 [shape = 'u32[144,128]{1,0:T(1,128)}', space=vmem, size = 0x12000, scoped, tag = 'internal scratch']
  %s0 = inlined_call_operand.hbm [shape: f32[2,4,256], index: 0, kind: input, shape index: {}]
  %s1 = inlined_call_operand.vmem [shape: f32[2,4], index: 1, kind: input, shape index: {}]
  %s2 = inlined_call_operand.vmem [shape: f32[2,1], index: 2, kind: input, shape index: {}]
  %s3 = inlined_call_operand.hbm [shape: f32[2,2,256], index: 3, kind: output, shape index: {}]
  %s4 = sld [smem:[#allocation0]]
  $region57: #{tpu_custom_call.1} parent=0
    _
  %s6 = ssub.s32 1, %s4
  %s7 = scalar_select 0, %s6, %s4
  $region1: #{tpu_custom_call.1} parent=0
    #allocation2 [shape = 'u8[8192]{0}', space=vmem, size = 0x2000, scoped, tag = 'input window, operand 0']
    #allocation3 [shape = 's32[2]{0}', space=sflag, size = 0x8, scoped, tag = 'scoped memory for tpu_custom_call.1']
    #allocation4 [shape = 's32[2]{0}', space=sflag, size = 0x8, scoped, tag = 'scoped memory for tpu_custom_call.1']
    #allocation5 [shape = 's32[2]{0}', space=sflag, size = 0x8, scoped, tag = 'scoped memory for tpu_custom_call.1']
    #allocation6 [shape = 'u8[1024]{0}', space=smem, size = 0x400, scoped, tag = 'input window, operand 1, single buffered']
    #allocation7 [shape = 'u8[1024]{0}', space=smem, size = 0x400, scoped, tag = 'input window, operand 2, single buffered']
    #allocation8 [shape = 's32[1]{0}', space=sflag, size = 0x4, scoped, tag = 'scoped memory for tpu_custom_call.1']
    #allocation9 [shape = 'u8[4096]{0}', space=vmem, size = 0x1000, scoped, tag = 'output window, operand 0']
    %8 = vsyncpa [#allocation3], 0
    %s9 = scalar_lea.sflag [#allocation3], 1
    %10 = vsyncpa %s9, 0
    %11 = vsyncpa [#allocation5], 0
    %12 = vsyncpa [#allocation8], 0
    %13 = vsyncpa [#allocation4], 0
    %s14 = scalar_lea.sflag [#allocation4], 1
    %15 = vsyncpa %s14, 0
    loop: start=0, step=1, limit=4
    $region2: #{tpu_custom_call.1} parent=1 // loop_pre_header
      _
    $region3: #{tpu_custom_call.1} parent=1 // loop_header
      %s17 = sphi 0, %s21
      %p18 = scmp.ge.s32.totalorder %s17, 4
      %s24 = sphi 0, %s36
      %s25 = sphi 0, %s32
      %s26 = sphi 0, %s24
      %s27 = sphi 0, %s25
      %s28 = sphi 0, %s26
      %s29 = sphi 0, %s27
      %s41 = sphi 0, %s43
      %s44 = sphi 0, %s41
      %s45 = sphi 0, %s44
      %s61 = sphi 0, %s45
      %s65 = sphi 0, %s65
      %s67 = sphi 0, %s65
      %s68 = sphi 0, %s67
      %s82 = sphi 0, %s68
      %s86 = sphi 0, %s86
      %s88 = sphi 0, %s86
      %s89 = sphi 0, %s88
      %s103 = sphi 0, %s89
      %s111 = sphi 0, %s113
      %s114 = sphi 0, %s111
      %s115 = sphi 0, %s114
      %s131 = sphi 0, %s115
    $region4: #{tpu_custom_call.1} parent=1 // loop_header_branch
      %20 = sbr.rel (%p18) target = $region8
    $region5: #{tpu_custom_call.1} parent=1 // loop_body
      %s22 = ssub.s32 %s17, 1
      %s23 = ssub.s32 %s17, 2
      %s30 = sadd.s32 1, %s25
      %p31 = scmp.ge.s32.totalorder %s30, 1
      %s32 = scalar_select %p31, 0, %s30
      %s33 = sadd.s32 1, %s24
      %s34 = scalar_select %p31, %s33, %s24
      %p35 = scmp.ge.s32.totalorder %s34, 2
      %s36 = scalar_select %p35, 0, %s34
      %s37 = ssub.s32 %s24, %s36
      %s38 = ssub.s32 %s25, %s32
      %s39 = sor.u32 %s37, %s38
      %p40 = scmp.eq.s32.totalorder %s39, 0
      %s42 = sadd.s32 %s41, 1
      %s43 = scalar_select %p40, %s41, %s42
      %p46 = pneg %p40
      %p47 = scmp.eq.s32.totalorder %s17, 1
      %p48 = por %p46, %p47
      %p49 = scmp.ne.s32.totalorder %s41, %s44
      %p50 = scmp.eq.s32.totalorder %s17, 0
      %p51 = por %p49, %p50
      %p52 = scmp.ne.s32.totalorder %s41, %s44
      %p53 = scmp.eq.s32.totalorder %s22, 1
      %p54 = por %p52, %p53
      %p55 = scmp.ne.s32.totalorder %s44, %s45
      %p56 = scmp.eq.s32.totalorder %s22, 0
      %p57 = por %p55, %p56
      %p58 = scmp.ne.s32.totalorder %s44, %s45
      %p59 = scmp.eq.s32.totalorder %s23, 1
      %p60 = por %p58, %p59
      %p62 = scmp.ne.s32.totalorder %s45, %s61
      %p63 = scmp.eq.s32.totalorder %s23, 0
      %p64 = por %p62, %p63
      %s66 = sadd.s32 %s65, 1
      %p69 = scmp.eq.s32.totalorder %s17, 1
      %p70 = scmp.ne.s32.totalorder %s65, %s67
      %p71 = scmp.eq.s32.totalorder %s17, 0
      %p72 = por %p70, %p71
      %p73 = scmp.ne.s32.totalorder %s65, %s67
      %p74 = scmp.eq.s32.totalorder %s22, 1
      %p75 = por %p73, %p74
      %p76 = scmp.ne.s32.totalorder %s67, %s68
      %p77 = scmp.eq.s32.totalorder %s22, 0
      %p78 = por %p76, %p77
      %p79 = scmp.ne.s32.totalorder %s67, %s68
      %p80 = scmp.eq.s32.totalorder %s23, 1
      %p81 = por %p79, %p80
      %p83 = scmp.ne.s32.totalorder %s68, %s82
      %p84 = scmp.eq.s32.totalorder %s23, 0
      %p85 = por %p83, %p84
      %s87 = sadd.s32 %s86, 1
      %p90 = scmp.eq.s32.totalorder %s17, 1
      %p91 = scmp.ne.s32.totalorder %s86, %s88
      %p92 = scmp.eq.s32.totalorder %s17, 0
      %p93 = por %p91, %p92
      %p94 = scmp.ne.s32.totalorder %s86, %s88
      %p95 = scmp.eq.s32.totalorder %s22, 1
      %p96 = por %p94, %p95
      %p97 = scmp.ne.s32.totalorder %s88, %s89
      %p98 = scmp.eq.s32.totalorder %s22, 0
      %p99 = por %p97, %p98
      %p100 = scmp.ne.s32.totalorder %s88, %s89
      %p101 = scmp.eq.s32.totalorder %s23, 1
      %p102 = por %p100, %p101
      %p104 = scmp.ne.s32.totalorder %s89, %s103
      %p105 = scmp.eq.s32.totalorder %s23, 0
      %p106 = por %p104, %p105
      %s107 = ssub.s32 %s24, %s36
      %s108 = ssub.s32 %s25, %s32
      %s109 = sor.u32 %s107, %s108
      %p110 = scmp.eq.s32.totalorder %s109, 0
      %s112 = sadd.s32 %s111, 1
      %s113 = scalar_select %p110, %s111, %s112
      %p116 = pneg %p110
      %p117 = scmp.eq.s32.totalorder %s17, 1
      %p118 = por %p116, %p117
      %p119 = scmp.ne.s32.totalorder %s111, %s114
      %p120 = scmp.eq.s32.totalorder %s17, 0
      %p121 = por %p119, %p120
      %p122 = scmp.ne.s32.totalorder %s111, %s114
      %p123 = scmp.eq.s32.totalorder %s22, 1
      %p124 = por %p122, %p123
      %p125 = scmp.ne.s32.totalorder %s114, %s115
      %p126 = scmp.eq.s32.totalorder %s22, 0
      %p127 = por %p125, %p126
      %p128 = scmp.ne.s32.totalorder %s114, %s115
      %p129 = scmp.eq.s32.totalorder %s23, 1
      %p130 = por %p128, %p129
      %p132 = scmp.ne.s32.totalorder %s115, %s131
      %p133 = scmp.eq.s32.totalorder %s23, 0
      %p134 = por %p132, %p133
      %p135 = scmp.le.s32.totalorder 1, %s17
      %p136 = scmp.lt.s32.totalorder %s17, 3
      %p137 = pnand %p135, %p136
      %p138 = pneg %p137
      // Predicated region
      $region9: #{tpu_custom_call.1} parent=5 // pred_check
        _
      $region10: #{tpu_custom_call.1} parent=5 // pred_check_branch
        %140 = sbr.rel (%p137) target = $region12
      $region11: #{tpu_custom_call.1} parent=5 // pred_region
        %s141 = ssub.s32 %s17, 1
        // Predicated region
        $region13: #{tpu_custom_call.1} parent=11 // pred_check
          %p142 = pneg %p78
        $region14: #{tpu_custom_call.1} parent=11 // pred_check_branch
          %144 = sbr.rel (%p142) target = $region16
        $region15: #{tpu_custom_call.1} parent=11 // pred_region
          %s146 = ssub.s32 32, 32
          %147 = vsyncadd [#allocation5], %s146
          %s149 = sshll.u32 %s1, 4
          %s150 = int_to_ptr.vmem [resolvable:$true] %s149
          %152 = dma.vmem_to_smem %s150, 32, [#allocation6], [#allocation5]
        $region16: #{tpu_custom_call.1} parent=11 // pred_fallthru
          _
        // Predicated region
        $region17: #{tpu_custom_call.1} parent=11 // pred_check
          %p153 = pneg %p99
        $region18: #{tpu_custom_call.1} parent=11 // pred_check_branch
          %155 = sbr.rel (%p153) target = $region20
        $region19: #{tpu_custom_call.1} parent=11 // pred_region
          %s157 = ssub.s32 32, 32
          %158 = vsyncadd [#allocation8], %s157
          %s160 = sshll.u32 %s2, 4
          %s161 = int_to_ptr.vmem [resolvable:$true] %s160
          %163 = dma.vmem_to_smem %s161, 32, [#allocation7], [#allocation8]
        $region20: #{tpu_custom_call.1} parent=11 // pred_fallthru
          _
      $region12: #{tpu_custom_call.1} parent=5 // pred_fallthru
        _
      %p164 = scmp.lt.s32.totalorder %s17, 2
      // Predicated region
      $region21: #{tpu_custom_call.1} parent=5 // pred_check
        %p165 = pneg %p164
      $region22: #{tpu_custom_call.1} parent=5 // pred_check_branch
        %167 = sbr.rel (%p165) target = $region24
      $region23: #{tpu_custom_call.1} parent=5 // pred_region
        // Predicated region
        $region25: #{tpu_custom_call.1} parent=23 // pred_check
          %p168 = pneg %p51
        $region26: #{tpu_custom_call.1} parent=23 // pred_check_branch
          %170 = sbr.rel (%p168) target = $region28
        $region27: #{tpu_custom_call.1} parent=23 // pred_region
          %s171 = sand.u32 %s41, 1
          %s172 = scalar_lea.sflag [#allocation3], %s171
          %s173 = sand.u32 %s41, 1
          %s174 = smul.addr %s173, 8
          %s175 = scalar_lea.vmem [#allocation2], %s174
          %s176 = smul.u32 2, %s25
          %s178 = ssub.s32 128, 128
          %179 = vsyncadd %s172, %s178
          %s180 = smul.addr %s24, 2
          %s181 = sadd.s32 %s176, %s180
          %s182 = smul.addr %s181, 64
          %s183 = scalar_lea.hbm %s0, %s182
          %s185 = sshll.u32 %s175, 4
          %s186 = int_to_ptr.vmem [resolvable:$true] %s185
          %188 = dma.hbm_to_vmem [thread:$0]  %s183, 128, %s186, %s172
        $region28: #{tpu_custom_call.1} parent=23 // pred_fallthru
          _
      $region24: #{tpu_custom_call.1} parent=5 // pred_fallthru
        _
      %p189 = scmp.le.s32.totalorder 1, %s17
      %p190 = scmp.lt.s32.totalorder %s17, 3
      %p191 = pnand %p189, %p190
      %p192 = pneg %p191
      // Predicated region
      $region29: #{tpu_custom_call.1} parent=5 // pred_check
        _
      $region30: #{tpu_custom_call.1} parent=5 // pred_check_branch
        %194 = sbr.rel (%p191) target = $region32
      $region31: #{tpu_custom_call.1} parent=5 // pred_region
        %s195 = ssub.s32 %s17, 1
        %s196 = sand.u32 %s44, 1
        %s197 = scalar_lea.sflag [#allocation3], %s196
        %s198 = sand.u32 %s44, 1
        %s199 = smul.addr %s198, 8
        %s200 = scalar_lea.vmem [#allocation2], %s199
        // Predicated region
        $region33: #{tpu_custom_call.1} parent=31 // pred_check
          %p201 = pneg %p57
        $region34: #{tpu_custom_call.1} parent=31 // pred_check_branch
          %203 = sbr.rel (%p201) target = $region36
        $region35: #{tpu_custom_call.1} parent=31 // pred_region
          %204 = dma.done %s197, 128
        $region36: #{tpu_custom_call.1} parent=31 // pred_fallthru
          _
        // Predicated region
        $region37: #{tpu_custom_call.1} parent=31 // pred_check
          %p205 = pneg %p78
        $region38: #{tpu_custom_call.1} parent=31 // pred_check_branch
          %207 = sbr.rel (%p205) target = $region40
        $region39: #{tpu_custom_call.1} parent=31 // pred_region
          %208 = dma.done [#allocation5], 32
        $region40: #{tpu_custom_call.1} parent=31 // pred_fallthru
          _
        // Predicated region
        $region41: #{tpu_custom_call.1} parent=31 // pred_check
          %p209 = pneg %p99
        $region42: #{tpu_custom_call.1} parent=31 // pred_check_branch
          %211 = sbr.rel (%p209) target = $region44
        $region43: #{tpu_custom_call.1} parent=31 // pred_region
          %212 = dma.done [#allocation8], 32
        $region44: #{tpu_custom_call.1} parent=31 // pred_fallthru
          _
        %213 = sfence
        %s214 = sand.u32 %s44, 1
        %s215 = scalar_lea.sflag [#allocation3], %s214
        %s216 = sand.u32 %s44, 1
        %s217 = smul.addr %s216, 8
        %s218 = scalar_lea.vmem [#allocation2], %s217
        %p219 = pneg %p57
        %p220 = pneg %p54
        %p221 = pneg %p78
        %p222 = pneg %p75
        %p223 = pneg %p99
        %p224 = pneg %p96
        %p225 = pneg %p127
        %p226 = pneg %p124
        %s227 = sand.u32 %s114, 1
        %s228 = scalar_lea.sflag [#allocation4], %s227
        %s229 = sand.u32 %s114, 1
        %s230 = smul.addr %s229, 4
        %s231 = scalar_lea.vmem [#allocation9], %s230
        %s232 = smul.u32 2, %s27
        %s233 = smul.u32 2, %s27
        %s234 = sld [smem:[#allocation7]]
        %v235 = vstv %s234
        %s236 = sld [smem:[#allocation7 + $0x80]]
        %v237 = vstv %s236
        %v238 = vld [vmem:[%s200] ss:$4 sm:$0x3]
        %s239 = sld [smem:[#allocation6]]
        %v240 = vstv %s239
        %v241 = vmul.f32 %v240, %v238
        %v242 = vadd.f32 %v235, %v241
        %s243 = sld [smem:[#allocation6 + $0x80]]
        %v244 = vstv %s243
        %v245 = vmul.f32 %v244, %v238
        %v246 = vadd.f32 %v237, %v245
        %s247 = scalar_lea.vmem %s200, 1 [#allocation2]
        %v248 = vld [vmem:[%s247] ss:$4 sm:$0x3]
        %s249 = sld [smem:[#allocation6 + $0x1]]
        %v250 = vstv %s249
        %v251 = vmul.f32 %v250, %v248
        %v252 = vadd.f32 %v242, %v251
        %s253 = sld [smem:[#allocation6 + $0x81]]
        %v254 = vstv %s253
        %v255 = vmul.f32 %v254, %v248
        %v256 = vadd.f32 %v246, %v255
        %s257 = scalar_lea.vmem %s200, 2 [#allocation2]
        %v258 = vld [vmem:[%s257] ss:$4 sm:$0x3]
        %s259 = sld [smem:[#allocation6 + $0x2]]
        %v260 = vstv %s259
        %v261 = vmul.f32 %v260, %v258
        %v262 = vadd.f32 %v252, %v261
        %s263 = sld [smem:[#allocation6 + $0x82]]
        %v264 = vstv %s263
        %v265 = vmul.f32 %v264, %v258
        %v266 = vadd.f32 %v256, %v265
        %s267 = scalar_lea.vmem %s200, 3 [#allocation2]
        %v268 = vld [vmem:[%s267] ss:$4 sm:$0x3]
        %s269 = sld [smem:[#allocation6 + $0x3]]
        %v270 = vstv %s269
        %v271 = vmul.f32 %v270, %v268
        %v272 = vadd.f32 %v262, %v271
        %s273 = sld [smem:[#allocation6 + $0x83]]
        %v274 = vstv %s273
        %v275 = vmul.f32 %v274, %v268
        %v276 = vadd.f32 %v266, %v275
        %v278 = vlaneseq
        %v279 = vshrl.u32 %v278, 7
        %v280 = vsub.s32 0, %v279
        %v281 = vrot.slane %v272, %v280
        %v282 = vlaneseq
        %v283 = vshrl.u32 %v282, 7
        %v284 = vsub.s32 1, %v283
        %v285 = vrot.slane %v272, %v284
        %v289 = vlaneseq
        %v290 = vshrl.u32 %v289, 7
        %v291 = vsub.s32 0, %v290
        %v292 = vrot.slane %v276, %v291
        %v293 = vlaneseq
        %v294 = vshrl.u32 %v293, 7
        %v295 = vsub.s32 1, %v294
        %v296 = vrot.slane %v276, %v295
        %vm299 = vcmask 1040384
        %v300 = vsel %vm299, %v281, %v292
        %v301 = vsel %vm299, %v285, %v296
        %v304 = vcombine.low %v300, %v301
        %v306 = vunpack.c.l.s4 1983009808
        %v307 = vunpack.c.0.s8 %v306
        %v308 = vlaneseq
        %v309 = vshrl.u32 %v308, 7
        %v310 = vsub.s32 %v307, %v309
        %v311 = vrot.slane %v304, %v310
        %313 = vst [vmem:[%s231] sm:$0xf] %v311
        %s314 = sand.u32 %s114, 1
        %s315 = scalar_lea.sflag [#allocation4], %s314
        %s316 = sand.u32 %s114, 1
        %s317 = smul.addr %s316, 4
        %s318 = scalar_lea.vmem [#allocation9], %s317
        // Predicated region
        $region45: #{tpu_custom_call.1} parent=31 // pred_check
          %p319 = pneg %p124
        $region46: #{tpu_custom_call.1} parent=31 // pred_check_branch
          %321 = sbr.rel (%p319) target = $region48
        $region47: #{tpu_custom_call.1} parent=31 // pred_region
          %s322 = smul.u32 2, %s27
          %s324 = ssub.s32 64, 64
          %325 = vsyncadd %s315, %s324
          %s326 = smul.addr %s26, 2
          %s327 = sadd.s32 %s322, %s326
          %s328 = smul.addr %s327, 32
          %s329 = scalar_lea.hbm %s3, %s328
          %s331 = sshll.u32 %s318, 4
          %s332 = int_to_ptr.vmem [resolvable:$true] %s331
          %334 = dma.vmem_to_hbm [thread:$0]  %s332, 64, %s329, %s315
        $region48: #{tpu_custom_call.1} parent=31 // pred_fallthru
          _
      $region32: #{tpu_custom_call.1} parent=5 // pred_fallthru
        _
      %p335 = scmp.le.s32.totalorder 2, %s17
      // Predicated region
      $region49: #{tpu_custom_call.1} parent=5 // pred_check
        %p336 = pneg %p335
      $region50: #{tpu_custom_call.1} parent=5 // pred_check_branch
        %338 = sbr.rel (%p336) target = $region52
      $region51: #{tpu_custom_call.1} parent=5 // pred_region
        %s339 = ssub.s32 %s17, 2
        // Predicated region
        $region53: #{tpu_custom_call.1} parent=51 // pred_check
          %p340 = pneg %p130
        $region54: #{tpu_custom_call.1} parent=51 // pred_check_branch
          %342 = sbr.rel (%p340) target = $region56
        $region55: #{tpu_custom_call.1} parent=51 // pred_region
          %s343 = sand.u32 %s115, 1
          %s344 = scalar_lea.sflag [#allocation4], %s343
          %s345 = sand.u32 %s115, 1
          %s346 = smul.addr %s345, 4
          %s347 = scalar_lea.vmem [#allocation9], %s346
          %348 = dma.done %s344, 64
        $region56: #{tpu_custom_call.1} parent=51 // pred_fallthru
          _
      $region52: #{tpu_custom_call.1} parent=5 // pred_fallthru
        _
    $region6: #{tpu_custom_call.1} parent=1 // loop_footer
      %s21 = sadd.s32 1, %s17
    $region7: #{tpu_custom_call.1} parent=1 // loop_footer_branch
      %16 = sbr.rel target = $region3
    $region8: #{tpu_custom_call.1} parent=1 // loop_exit
      _
    %349 = vsyncpa [#allocation3], 1
    %s350 = scalar_lea.sflag [#allocation3], 1
    %351 = vsyncpa %s350, 1
    %352 = vsyncpa [#allocation4], 1
    %s353 = scalar_lea.sflag [#allocation4], 1
    %354 = vsyncpa %s353, 1
    %355 = vsyncpa [#allocation5], 1
    %s356 = scalar_lea.sflag [#allocation5], 1
    %357 = vsyncpa %s356, 1
    %358 = vsyncpa [#allocation8], 1

</llo_original>
